<compile_context>
chip_gen: v7x
topology: tpu7x:2x2x1
jax: 0.10.0
libtpu: 0.0.40
codegen_flags: <defaults>
</compile_context>

<pallas_src>
import math

import jax
import jax.numpy as jnp
from jax.experimental import pallas as pl
from jax.experimental.pallas import tpu as pltpu


def _relu6(x):
    return jnp.minimum(jnp.maximum(x, 0.0), 6.0)


def _lcm(a, b):
    return a * b // math.gcd(a, b)


def _round_up(a, b):
    return ((a + b - 1) // b) * b


def _cdiv(a, b):
    return (a + b - 1) // b


def _inverted_block1d_kernel(x_ref, mask_ref, w1_ref, b1_ref, w2_ref, b2_ref,
                             w3_ref, b3_ref, o_ref):
    x = x_ref[...]                                   # (Cin, T) f32, lane-dense
    T = x.shape[1]

    # conv1: 1x1 pointwise on the MXU (bf16 operands, f32 accumulation) + ReLU6.
    y1 = jnp.dot(w1_ref[...], x.astype(jnp.bfloat16),
                 preferred_element_type=jnp.float32) + b1_ref[...]
    y1 = _relu6(y1)                                  # (H, T) f32

    # conv2: depthwise, kernel_size=3, stride=1, zero pad=1 per sample.
    # Neighbours come from XLU lane rotations; precomputed 0/1 masks (hoisted to
    # a grid-invariant input) zero the taps that would cross a sample boundary.
    # Tile boundaries always coincide with sample boundaries, so the roll wrap
    # at the tile edge is masked too.
    m = mask_ref[...]                                # (2, T) f32: [has_left, has_right]
    y_left = m[0:1, :] * pltpu.roll(y1, 1, 1)        # y1[:, s-1]
    y_right = m[1:2, :] * pltpu.roll(y1, T - 1, 1)   # y1[:, s+1]
    w2 = w2_ref[...]
    # TODO(synk): kernel sizes other than 3 / even sizes not implemented (module default k=3).
    y2 = _relu6(w2[:, 0:1] * y_left + w2[:, 1:2] * y1 + w2[:, 2:3] * y_right
                + b2_ref[...])

    # conv3: 1x1 pointwise back to Cin on the MXU (no activation inside conv3),
    # then the block's trailing ReLU6 activation.
    y3 = jnp.dot(w3_ref[...], y2.astype(jnp.bfloat16),
                 preferred_element_type=jnp.float32) + b3_ref[...]
    o_ref[...] = _relu6(y3).astype(o_ref.dtype)


def conv_inverted_block1d(x, w1, b1, w2, b2, w3, b3, *,
                          target_tile_lanes=32768,
                          vmem_tile_budget_bytes=12 * 1024 * 1024):
    """x: (N, Cin, L) float32. Returns (N, Cin, L) float32.

    Weights: w1 (H, Cin), b1 (H, 1), w2 (H, 3), b2 (H, 1), w3 (Cin, H), b3 (Cin, 1).
    """
    N, Cin, L = x.shape
    H = w1.shape[0]
    S = N * L
    # TODO(synk): conv1 stride > 1 of ConvNormActivation1d not implemented; module default stride=1 is used.
    # TODO(synk): channel_shuffle=True path (nn.ChannelShuffle) not implemented; module default is False.

    # ---- lane-tile planning -------------------------------------------------
    # Tiles are multiples of lcm(L, 128): lane-dense (unmasked vst) AND tile
    # boundaries coincide with sample boundaries (no k=3 halo across tiles).
    base = _lcm(L, 128)
    # Rough per-lane VMEM footprint: double-buffered in/out blocks (Cin rows
    # each), double-buffered (2, T) mask block, ~6 live (H, T) f32 temporaries.
    bytes_per_lane = 4 * (4 * Cin + 4 + 6 * H)
    budget_units = max(1, (vmem_tile_budget_bytes // bytes_per_lane) // base)
    target_units = max(1, target_tile_lanes // base)
    n_units = _cdiv(S, base)

    units = max(1, min(target_units, budget_units, n_units))
    num_tiles = _cdiv(n_units, units)
    if num_tiles == 1 and n_units >= 2:
        # Keep >= 2 lane tiles so the "parallel" grid axis can split across
        # v7x's two TensorCores (a second big tile is ~free on 1-TC chips).
        units = _cdiv(n_units, 2)
        num_tiles = _cdiv(n_units, units)
    elif num_tiles > 2 and num_tiles % 2 == 1:
        # Prefer an even tile count so the two v7x cores stay balanced.
        alt_units = _cdiv(n_units, num_tiles + 1)
        alt_tiles = _cdiv(n_units, alt_units)
        if alt_tiles % 2 == 0:
            units, num_tiles = alt_units, alt_tiles
    tile_s = units * base
    s_pad = num_tiles * tile_s
    # TODO(synk): if a single sample (base lanes) already exceeds the VMEM budget,
    # splitting it would need an explicit k=3 halo exchange between lane tiles;
    # we keep one per-sample tile and only raise the scoped-VMEM limit instead.

    # ---- wrapper-side layout fold ------------------------------------------
    # (N, Cin, L) -> (Cin, N*L) so the kernel is lane-dense with unmasked stores.
    # TODO(synk): callers that can supply channel-major (Cin, N*L) data directly
    # would skip this transpose/pad and the inverse transpose below (these
    # wrapper passes are ~3x the minimum HBM traffic for large inputs).
    xf = jnp.transpose(x, (1, 0, 2)).reshape(Cin, S)
    if s_pad != S:
        xf = jnp.pad(xf, ((0, 0), (0, s_pad - S)))   # padded lanes are discarded

    # Grid-invariant depthwise boundary masks (tile_s % L == 0, so the pattern
    # is identical for every lane tile); fetched once via a constant index_map.
    pos = jnp.arange(tile_s, dtype=jnp.int32)
    has_left = (pos % L) != 0
    has_right = (pos % L) != (L - 1)
    masks = jnp.stack([has_left, has_right]).astype(x.dtype)     # (2, tile_s)

    # 1x1-conv weights are fed to the MXU as bf16 (single MXU pass, f32 accum).
    w1b = w1.astype(jnp.bfloat16)
    w3b = w3.astype(jnp.bfloat16)

    est_vmem = bytes_per_lane * tile_s + (1 << 20)
    # >= 32 MiB (raises v5e's 16 MiB scoped default), <= 56 MiB (< v7x physical).
    vmem_limit = int(min(max(32 << 20, 2 * est_vmem), 56 << 20))

    out_flat = pl.pallas_call(
        _inverted_block1d_kernel,
        out_shape=jax.ShapeDtypeStruct((Cin, s_pad), x.dtype),
        grid_spec=pltpu.PrefetchScalarGridSpec(
            num_scalar_prefetch=0,
            grid=(num_tiles,),
            in_specs=[
                pl.BlockSpec((Cin, tile_s), lambda t: (0, t)),   # x lane tile
                pl.BlockSpec((2, tile_s), lambda t: (0, 0)),     # boundary masks
                pl.BlockSpec((H, Cin), lambda t: (0, 0)),        # W1 (bf16)
                pl.BlockSpec((H, 1), lambda t: (0, 0)),          # b1
                pl.BlockSpec((H, 3), lambda t: (0, 0)),          # W2 depthwise taps
                pl.BlockSpec((H, 1), lambda t: (0, 0)),          # b2
                pl.BlockSpec((Cin, H), lambda t: (0, 0)),        # W3 (bf16)
                pl.BlockSpec((Cin, 1), lambda t: (0, 0)),        # b3
            ],
            out_specs=pl.BlockSpec((Cin, tile_s), lambda t: (0, t)),
        ),
        compiler_params=pltpu.CompilerParams(
            dimension_semantics=("parallel",),
            vmem_limit_bytes=vmem_limit),
    )(xf, masks, w1b, b1, w2, b2, w3b, b3)

    out = out_flat[:, :S].reshape(Cin, N, L)
    return jnp.transpose(out, (1, 0, 2))


def _reference(x, w1, b1, w2, b2, w3, b3):
    # Exact-f32 reference (HIGHEST matmul precision) with the original
    # per-sample pad-based math, independent of the kernel's flatten/roll/mask
    # and bf16-MXU implementation.
    hp = jax.lax.Precision.HIGHEST

    def one(xb):                                          # xb: (Cin, L)
        y1 = _relu6(jnp.einsum('hc,cl->hl', w1, xb, precision=hp) + b1)
        L = y1.shape[1]
        y1p = jnp.pad(y1, ((0, 0), (1, 1)))
        y2 = _relu6(w2[:, 0:1] * y1p[:, 0:L]
                    + w2[:, 1:2] * y1p[:, 1:L + 1]
                    + w2[:, 2:3] * y1p[:, 2:L + 2] + b2)
        return _relu6(jnp.einsum('ch,hl->cl', w3, y2, precision=hp) + b3)

    return jax.vmap(one)(x)


if __name__ == "__main__":
    # Module config: in_channels=4, expansion_ratio=2.0 -> hidden=8, kernel_size=3, stride=1
    N, Cin, L = 2, 4, 16
    H = round(Cin * 2.0)

    key = jax.random.PRNGKey(0)
    kx, k1, kb1, k2, kb2, k3, kb3 = jax.random.split(key, 7)

    x = jax.random.normal(kx, (N, Cin, L), dtype=jnp.float32)
    # conv1 weight (H, Cin, 1) -> (H, Cin); conv2 depthwise (H, 1, 3) -> (H, 3);
    # conv3 weight (Cin, H, 1) -> (Cin, H). Biases as (C, 1) for broadcasting.
    w1 = 0.2 * jax.random.normal(k1, (H, Cin), dtype=jnp.float32)
    b1 = 0.1 * jax.random.normal(kb1, (H, 1), dtype=jnp.float32)
    w2 = 0.2 * jax.random.normal(k2, (H, 3), dtype=jnp.float32)
    b2 = 0.1 * jax.random.normal(kb2, (H, 1), dtype=jnp.float32)
    w3 = 0.2 * jax.random.normal(k3, (Cin, H), dtype=jnp.float32)
    b3 = 0.1 * jax.random.normal(kb3, (Cin, 1), dtype=jnp.float32)

    out = conv_inverted_block1d(x, w1, b1, w2, b2, w3, b3)
    out = jax.block_until_ready(out)

    ref = _reference(x, w1, b1, w3 * 0 + w3, b3)[0] if False else _reference(
        x, w1, b1, w2, b2, w3, b3)
    assert out.shape == (N, Cin, L)
    # Tolerance is relaxed because the 1x1 convs use bf16 MXU operands
    # (f32 accumulation); expected deviation vs the exact-f32 reference is
    # O(1e-2) for these ReLU6-bounded activations.
    assert jnp.allclose(out, ref, rtol=5e-2, atol=5e-2), "mismatch vs reference"

    print("KERNEL_OK")
</pallas_src>

<mosaic_0001>
module attributes {stable_mosaic.version = 11 : i64} {
  func.func @_inverted_block1d_kernel(%arg0: i32, %arg1: memref<4x128xf32, #tpu.memory_space<vmem>>, %arg2: memref<2x128xf32, #tpu.memory_space<vmem>>, %arg3: memref<8x4xbf16, #tpu.memory_space<vmem>>, %arg4: memref<8x1xf32, #tpu.memory_space<vmem>>, %arg5: memref<8x3xf32, #tpu.memory_space<vmem>>, %arg6: memref<8x1xf32, #tpu.memory_space<vmem>>, %arg7: memref<4x8xbf16, #tpu.memory_space<vmem>>, %arg8: memref<4x1xf32, #tpu.memory_space<vmem>>, %arg9: memref<4x128xf32, #tpu.memory_space<vmem>>) attributes {dimension_semantics = [#tpu.dimension_semantics<parallel>], iteration_bounds = array<i64: 1>, scalar_prefetch = 0 : i64, scratch_operands = 0 : i64, tpu.core_type = #tpu.core_type<tc>, window_params = [{transform_indices = @transform_0, window_bounds = array<i64: 4, 128>}, {pipeline_mode = #tpu.pipeline_mode<synchronous>, transform_indices = @transform_1, window_bounds = array<i64: 2, 128>}, {pipeline_mode = #tpu.pipeline_mode<synchronous>, transform_indices = @transform_2, window_bounds = array<i64: 8, 4>}, {pipeline_mode = #tpu.pipeline_mode<synchronous>, transform_indices = @transform_3, window_bounds = array<i64: 8, 1>}, {pipeline_mode = #tpu.pipeline_mode<synchronous>, transform_indices = @transform_4, window_bounds = array<i64: 8, 3>}, {pipeline_mode = #tpu.pipeline_mode<synchronous>, transform_indices = @transform_5, window_bounds = array<i64: 8, 1>}, {pipeline_mode = #tpu.pipeline_mode<synchronous>, transform_indices = @transform_6, window_bounds = array<i64: 4, 8>}, {pipeline_mode = #tpu.pipeline_mode<synchronous>, transform_indices = @transform_7, window_bounds = array<i64: 4, 1>}, {transform_indices = @transform_8, window_bounds = array<i64: 4, 128>}]} {
    %c0 = arith.constant 0 : index
    %c0_0 = arith.constant 0 : index
    %0 = vector.load %arg1[%c0, %c0_0] : memref<4x128xf32, #tpu.memory_space<vmem>>, vector<4x128xf32>
    %c0_1 = arith.constant 0 : index
    %c0_2 = arith.constant 0 : index
    %1 = vector.load %arg3[%c0_1, %c0_2] : memref<8x4xbf16, #tpu.memory_space<vmem>>, vector<8x4xbf16>
    %2 = arith.truncf %0 : vector<4x128xf32> to vector<4x128xbf16>
    %cst = arith.constant dense<0.000000e+00> : vector<8x128xf32>
    %3 = tpu.matmul %1, %2, %cst {dimension_numbers = #tpu.dot_dimension_numbers<[1], [0], [0], [1], [0, 0, 1, 1], [], []>} : vector<8x4xbf16>, vector<4x128xbf16>, vector<8x128xf32> -> vector<8x128xf32>
    %c0_3 = arith.constant 0 : index
    %c0_4 = arith.constant 0 : index
    %4 = vector.load %arg4[%c0_3, %c0_4] : memref<8x1xf32, #tpu.memory_space<vmem>>, vector<8x1xf32>
    %5 = vector.broadcast %4 : vector<8x1xf32> to vector<8x128xf32>
    %6 = arith.addf %3, %5 : vector<8x128xf32>
    %cst_5 = arith.constant 0.000000e+00 : f32
    %7 = vector.broadcast %cst_5 : f32 to vector<8x128xf32>
    %8 = arith.maximumf %6, %7 : vector<8x128xf32>
    %cst_6 = arith.constant 6.000000e+00 : f32
    %9 = vector.broadcast %cst_6 : f32 to vector<8x128xf32>
    %10 = arith.minimumf %8, %9 : vector<8x128xf32>
    %c0_7 = arith.constant 0 : index
    %c0_8 = arith.constant 0 : index
    %11 = vector.load %arg2[%c0_7, %c0_8] : memref<2x128xf32, #tpu.memory_space<vmem>>, vector<2x128xf32>
    %12 = vector.extract_strided_slice %11 {offsets = [0, 0], sizes = [1, 128], strides = [1, 1]} : vector<2x128xf32> to vector<1x128xf32>
    %c1_i32 = arith.constant 1 : i32
    %13 = tpu.dynamic_rotate %10 by %c1_i32 dim 1 : vector<8x128xf32>, i32 -> vector<8x128xf32>
    %14 = vector.broadcast %12 : vector<1x128xf32> to vector<8x128xf32>
    %15 = arith.mulf %14, %13 : vector<8x128xf32>
    %16 = vector.extract_strided_slice %11 {offsets = [1, 0], sizes = [1, 128], strides = [1, 1]} : vector<2x128xf32> to vector<1x128xf32>
    %c127_i32 = arith.constant 127 : i32
    %17 = tpu.dynamic_rotate %10 by %c127_i32 dim 1 : vector<8x128xf32>, i32 -> vector<8x128xf32>
    %18 = vector.broadcast %16 : vector<1x128xf32> to vector<8x128xf32>
    %19 = arith.mulf %18, %17 : vector<8x128xf32>
    %c0_9 = arith.constant 0 : index
    %c0_10 = arith.constant 0 : index
    %20 = vector.load %arg5[%c0_9, %c0_10] : memref<8x3xf32, #tpu.memory_space<vmem>>, vector<8x3xf32>
    %21 = vector.extract_strided_slice %20 {offsets = [0, 0], sizes = [8, 1], strides = [1, 1]} : vector<8x3xf32> to vector<8x1xf32>
    %22 = vector.broadcast %21 : vector<8x1xf32> to vector<8x128xf32>
    %23 = arith.mulf %22, %15 : vector<8x128xf32>
    %24 = vector.extract_strided_slice %20 {offsets = [0, 1], sizes = [8, 1], strides = [1, 1]} : vector<8x3xf32> to vector<8x1xf32>
    %25 = vector.broadcast %24 : vector<8x1xf32> to vector<8x128xf32>
    %26 = arith.mulf %25, %10 : vector<8x128xf32>
    %27 = arith.addf %23, %26 : vector<8x128xf32>
    %28 = vector.extract_strided_slice %20 {offsets = [0, 2], sizes = [8, 1], strides = [1, 1]} : vector<8x3xf32> to vector<8x1xf32>
    %29 = vector.broadcast %28 : vector<8x1xf32> to vector<8x128xf32>
    %30 = arith.mulf %29, %19 : vector<8x128xf32>
    %31 = arith.addf %27, %30 : vector<8x128xf32>
    %c0_11 = arith.constant 0 : index
    %c0_12 = arith.constant 0 : index
    %32 = vector.load %arg6[%c0_11, %c0_12] : memref<8x1xf32, #tpu.memory_space<vmem>>, vector<8x1xf32>
    %33 = vector.broadcast %32 : vector<8x1xf32> to vector<8x128xf32>
    %34 = arith.addf %31, %33 : vector<8x128xf32>
    %cst_13 = arith.constant 0.000000e+00 : f32
    %35 = vector.broadcast %cst_13 : f32 to vector<8x128xf32>
    %36 = arith.maximumf %34, %35 : vector<8x128xf32>
    %cst_14 = arith.constant 6.000000e+00 : f32
    %37 = vector.broadcast %cst_14 : f32 to vector<8x128xf32>
    %38 = arith.minimumf %36, %37 : vector<8x128xf32>
    %c0_15 = arith.constant 0 : index
    %c0_16 = arith.constant 0 : index
    %39 = vector.load %arg7[%c0_15, %c0_16] : memref<4x8xbf16, #tpu.memory_space<vmem>>, vector<4x8xbf16>
    %40 = arith.truncf %38 : vector<8x128xf32> to vector<8x128xbf16>
    %cst_17 = arith.constant dense<0.000000e+00> : vector<4x128xf32>
    %41 = tpu.matmul %39, %40, %cst_17 {dimension_numbers = #tpu.dot_dimension_numbers<[1], [0], [0], [1], [0, 0, 1, 1], [], []>} : vector<4x8xbf16>, vector<8x128xbf16>, vector<4x128xf32> -> vector<4x128xf32>
    %c0_18 = arith.constant 0 : index
    %c0_19 = arith.constant 0 : index
    %42 = vector.load %arg8[%c0_18, %c0_19] : memref<4x1xf32, #tpu.memory_space<vmem>>, vector<4x1xf32>
    %43 = vector.broadcast %42 : vector<4x1xf32> to vector<4x128xf32>
    %44 = arith.addf %41, %43 : vector<4x128xf32>
    %cst_20 = arith.constant 0.000000e+00 : f32
    %45 = vector.broadcast %cst_20 : f32 to vector<4x128xf32>
    %46 = arith.maximumf %44, %45 : vector<4x128xf32>
    %cst_21 = arith.constant 6.000000e+00 : f32
    %47 = vector.broadcast %cst_21 : f32 to vector<4x128xf32>
    %48 = arith.minimumf %46, %47 : vector<4x128xf32>
    %c0_22 = arith.constant 0 : index
    %c0_23 = arith.constant 0 : index
    %49 = vector.load %arg9[%c0_22, %c0_23] : memref<4x128xf32, #tpu.memory_space<vmem>>, vector<4x128xf32>
    tpu.vector_store %arg9[%c0_22, %c0_23], %48 {strides = array<i32>} : memref<4x128xf32, #tpu.memory_space<vmem>>, vector<4x128xf32>,
    return
  }
  func.func @transform_0(%arg0: i32) -> (i32, i32) {
    %c0_i32 = arith.constant 0 : i32
    %c0_i32_0 = arith.constant 0 : i32
    return %c0_i32, %arg0 : i32, i32
  }
  func.func @transform_1(%arg0: i32) -> (i32, i32) {
    %c0_i32 = arith.constant 0 : i32
    %c0_i32_0 = arith.constant 0 : i32
    %c0_i32_1 = arith.constant 0 : i32
    return %c0_i32, %c0_i32_0 : i32, i32
  }
  func.func @transform_2(%arg0: i32) -> (i32, i32) {
    %c0_i32 = arith.constant 0 : i32
    %c0_i32_0 = arith.constant 0 : i32
    %c0_i32_1 = arith.constant 0 : i32
    return %c0_i32, %c0_i32_0 : i32, i32
  }
  func.func @transform_3(%arg0: i32) -> (i32, i32) {
    %c0_i32 = arith.constant 0 : i32
    %c0_i32_0 = arith.constant 0 : i32
    %c0_i32_1 = arith.constant 0 : i32
    return %c0_i32, %c0_i32_0 : i32, i32
  }
  func.func @transform_4(%arg0: i32) -> (i32, i32) {
    %c0_i32 = arith.constant 0 : i32
    %c0_i32_0 = arith.constant 0 : i32
    %c0_i32_1 = arith.constant 0 : i32
    return %c0_i32, %c0_i32_0 : i32, i32
  }
  func.func @transform_5(%arg0: i32) -> (i32, i32) {
    %c0_i32 = arith.constant 0 : i32
    %c0_i32_0 = arith.constant 0 : i32
    %c0_i32_1 = arith.constant 0 : i32
    return %c0_i32, %c0_i32_0 : i32, i32
  }
  func.func @transform_6(%arg0: i32) -> (i32, i32) {
    %c0_i32 = arith.constant 0 : i32
    %c0_i32_0 = arith.constant 0 : i32
    %c0_i32_1 = arith.constant 0 : i32
    return %c0_i32, %c0_i32_0 : i32, i32
  }
  func.func @transform_7(%arg0: i32) -> (i32, i32) {
    %c0_i32 = arith.constant 0 : i32
    %c0_i32_0 = arith.constant 0 : i32
    %c0_i32_1 = arith.constant 0 : i32
    return %c0_i32, %c0_i32_0 : i32, i32
  }
  func.func @transform_8(%arg0: i32) -> (i32, i32) {
    %c0_i32 = arith.constant 0 : i32
    %c0_i32_0 = arith.constant 0 : i32
    return %c0_i32, %arg0 : i32, i32
  }
}

</mosaic_0001>

<llo_original>
// kernel: tpu_custom_call.1
$region0: #{tpu_custom_call.1}
  #allocation0 [shape = 'u32[]', space=smem, size = 0x4, offset = 0x4, fixed_abs, tag = 'smem constant byte address 0x4 - core index']
  #allocation1 [shape = 'u32[144,128]{1,0:T(1,128)}', space=vmem, size = 0x12000, scoped, tag = 'internal scratch']
  %s0 = inlined_call_operand.vmem [shape: f32[4,128], index: 0, kind: input, shape index: {}]
  %s1 = inlined_call_operand.vmem [shape: f32[2,128], index: 1, kind: input, shape index: {}]
  %s2 = inlined_call_operand.vmem [shape: bf16[8,4], index: 2, kind: input, shape index: {}]
  %s3 = inlined_call_operand.vmem [shape: f32[8,1], index: 3, kind: input, shape index: {}]
  %s4 = inlined_call_operand.vmem [shape: f32[8,3], index: 4, kind: input, shape index: {}]
  %s5 = inlined_call_operand.vmem [shape: f32[8,1], index: 5, kind: input, shape index: {}]
  %s6 = inlined_call_operand.vmem [shape: bf16[4,8], index: 6, kind: input, shape index: {}]
  %s7 = inlined_call_operand.vmem [shape: f32[4,1], index: 7, kind: input, shape index: {}]
  %s8 = inlined_call_operand.hbm [shape: f32[4,128], index: 8, kind: output, shape index: {}]
  %s9 = sld [smem:[#allocation0]]
  $region42: #{tpu_custom_call.1} parent=0
    _
  %s11 = ssub.s32 1, %s9
  %s12 = scalar_select 0, %s11, %s9
  $region1: #{tpu_custom_call.1} parent=0
    #allocation2 [shape = 'u8[2048]{0}', space=vmem, size = 0x800, scoped, tag = 'output window, operand 0, single buffered']
    #allocation3 [shape = 's32[1]{0}', space=sflag, size = 0x4, scoped, tag = 'scoped memory for tpu_custom_call.1']
    %13 = vsyncpa [#allocation3], 0
    // Predicated region
    $region2: #{tpu_custom_call.1} parent=1 // pred_check
      _
    $region3: #{tpu_custom_call.1} parent=1 // pred_check_branch
      %15 = sbr.rel (0) target = $region5
    $region4: #{tpu_custom_call.1} parent=1 // pred_region
      _
    $region5: #{tpu_custom_call.1} parent=1 // pred_fallthru
      _
    // Predicated region
    $region6: #{tpu_custom_call.1} parent=1 // pred_check
      _
    $region7: #{tpu_custom_call.1} parent=1 // pred_check_branch
      %17 = sbr.rel (0) target = $region9
    $region8: #{tpu_custom_call.1} parent=1 // pred_region
      _
    $region9: #{tpu_custom_call.1} parent=1 // pred_fallthru
      _
    // Predicated region
    $region10: #{tpu_custom_call.1} parent=1 // pred_check
      _
    $region11: #{tpu_custom_call.1} parent=1 // pred_check_branch
      %19 = sbr.rel (0) target = $region13
    $region12: #{tpu_custom_call.1} parent=1 // pred_region
      _
    $region13: #{tpu_custom_call.1} parent=1 // pred_fallthru
      _
    // Predicated region
    $region14: #{tpu_custom_call.1} parent=1 // pred_check
      _
    $region15: #{tpu_custom_call.1} parent=1 // pred_check_branch
      %21 = sbr.rel (0) target = $region17
    $region16: #{tpu_custom_call.1} parent=1 // pred_region
      _
    $region17: #{tpu_custom_call.1} parent=1 // pred_fallthru
      _
    // Predicated region
    $region18: #{tpu_custom_call.1} parent=1 // pred_check
      _
    $region19: #{tpu_custom_call.1} parent=1 // pred_check_branch
      %23 = sbr.rel (0) target = $region21
    $region20: #{tpu_custom_call.1} parent=1 // pred_region
      _
    $region21: #{tpu_custom_call.1} parent=1 // pred_fallthru
      _
    // Predicated region
    $region22: #{tpu_custom_call.1} parent=1 // pred_check
      _
    $region23: #{tpu_custom_call.1} parent=1 // pred_check_branch
      %25 = sbr.rel (0) target = $region25
    $region24: #{tpu_custom_call.1} parent=1 // pred_region
      _
    $region25: #{tpu_custom_call.1} parent=1 // pred_fallthru
      _
    // Predicated region
    $region26: #{tpu_custom_call.1} parent=1 // pred_check
      _
    $region27: #{tpu_custom_call.1} parent=1 // pred_check_branch
      %27 = sbr.rel (0) target = $region29
    $region28: #{tpu_custom_call.1} parent=1 // pred_region
      _
    $region29: #{tpu_custom_call.1} parent=1 // pred_fallthru
      _
    // Predicated region
    $region30: #{tpu_custom_call.1} parent=1 // pred_check
      _
    $region31: #{tpu_custom_call.1} parent=1 // pred_check_branch
      %29 = sbr.rel (0) target = $region33
    $region32: #{tpu_custom_call.1} parent=1 // pred_region
      _
    $region33: #{tpu_custom_call.1} parent=1 // pred_fallthru
      _
    %v31 = vld [vmem:[%s0] sm:$0xf]
    %v32 = vld [vmem:[%s2] sm:$0xf]
    %v33 = vpack.c.bf16 %v31, %v31
    %v34 = vld [vmem:[%s3] sm:$0xff]
    %36 = vset.pattern.permute.xlu0 0
    %37 = vperm.xlu0 %36, %v34
    %v38 = vpop.permute.xlu0 %37
    %vm40 = vcmask 31744
    %v42 = vsel %vm40, %v32, 0
    %vm44 = vcmask 1041408
    %v46 = vsel %vm44, %v33, 0
    %48 = vmatprep.subr.bf16.mxu0 0
    %49 = vmatpush1.bf16.msra.mxu0 %v46
    %50 = vmatprep.subr.bf16.mxu0 0
    %51 = vmatpush1.bf16.msra.mxu0 0
    %52 = vmatprep.subr.bf16.mxu0 0
    %53 = vmatpush1.bf16.msra.mxu0 0
    %54 = vmatprep.subr.bf16.mxu0 0
    %55 = vmatpush1.bf16.msra.mxu0 0
    %56 = vmatprep.subr.bf16.mxu0 0
    %57 = vmatpush1.bf16.msra.mxu0 0
    %58 = vmatprep.subr.bf16.mxu0 0
    %59 = vmatpush1.bf16.msra.mxu0 0
    %60 = vmatprep.subr.bf16.mxu0 0
    %61 = vmatpush1.bf16.msra.mxu0 0
    %62 = vmatprep.subr.bf16.mxu0 0
    %63 = vmatpush1.bf16.msra.mxu0 0
    %64 = vmatprep.subr.bf16.mxu0 0
    %65 = vmatpush1.bf16.msra.mxu0 0
    %66 = vmatprep.subr.bf16.mxu0 0
    %67 = vmatpush1.bf16.msra.mxu0 0
    %68 = vmatprep.subr.bf16.mxu0 0
    %69 = vmatpush1.bf16.msra.mxu0 0
    %70 = vmatprep.subr.bf16.mxu0 0
    %71 = vmatpush1.bf16.msra.mxu0 0
    %72 = vmatprep.subr.bf16.mxu0 0
    %73 = vmatpush1.bf16.msra.mxu0 0
    %74 = vmatprep.subr.bf16.mxu0 0
    %75 = vmatpush1.bf16.msra.mxu0 0
    %76 = vmatprep.subr.bf16.mxu0 0
    %77 = vmatpush1.bf16.msra.mxu0 0
    %78 = vmatprep.subr.bf16.mxu0 0
    %79 = vmatpush1.bf16.msra.mxu0 0
    %80 = vmatprep.mubr.bf16.mxu0 0
    %81 = vmatmul.mubr.bf16.gmra.mrb[0].mxu0 %v42
    %v82 = vpop.f32.mrb[0].mxu0
    %v83 = vadd.f32 %v38, %v82
    %v84 = vpop.f32.mrb[0].mxu0
    %v85 = vpop.f32.mrb[0].mxu0
    %v86 = vpop.f32.mrb[0].mxu0
    %87 = vdwg.mxu0
    %v88 = vmax.f32 %v83, 0.0
    %v89 = vmin.f32 %v88, 6.0
    %v90 = vld [vmem:[%s1] sm:$0x3]
    %91 = vrot.lane.b32.xlu0 %v89, 1
    %v92 = vpop.permute.xlu0 %91
    %v93 = vlaneseq
    %v94 = vshrl.u32 %v93, 7
    %v95 = vsub.s32 0, %v94
    %v96 = vrot.slane %v90, %v95
    %v97 = vmul.f32 %v96, %v92
    %98 = vrot.lane.b32.xlu0 %v89, 127
    %v99 = vpop.permute.xlu0 %98
    %v100 = vlaneseq
    %v101 = vshrl.u32 %v100, 7
    %v102 = vsub.s32 1, %v101
    %v103 = vrot.slane %v90, %v102
    %v104 = vmul.f32 %v103, %v99
    %v105 = vld [vmem:[%s4] sm:$0xff]
    %107 = vset.pattern.permute.xlu0 0
    %108 = vperm.xlu0 %107, %v105
    %v109 = vpop.permute.xlu0 %108
    %v111 = vmul.f32 %v109, %v97
    %112 = vset.pattern.permute.xlu0 1
    %113 = vperm.xlu0 %112, %v105
    %v114 = vpop.permute.xlu0 %113
    %v116 = vmul.f32 %v114, %v89
    %v117 = vadd.f32 %v111, %v116
    %118 = vset.pattern.permute.xlu0 2
    %119 = vperm.xlu0 %118, %v105
    %v120 = vpop.permute.xlu0 %119
    %v122 = vmul.f32 %v120, %v104
    %v123 = vadd.f32 %v117, %v122
    %v124 = vld [vmem:[%s5] sm:$0xff]
    %126 = vset.pattern.permute.xlu0 0
    %127 = vperm.xlu0 %126, %v124
    %v128 = vpop.permute.xlu0 %127
    %v130 = vadd.f32 %v123, %v128
    %v131 = vmax.f32 %v130, 0.0
    %v132 = vmin.f32 %v131, 6.0
    %v133 = vld [vmem:[%s6] sm:$0x3]
    %v134 = vpack.c.bf16 %v132, %v132
    %v135 = vld [vmem:[%s7] sm:$0xf]
    %137 = vset.pattern.permute.xlu0 0
    %138 = vperm.xlu0 %137, %v135
    %v139 = vpop.permute.xlu0 %138
    %vm141 = vcmask 64512
    %v143 = vsel %vm141, %v133, 0
    %vm145 = vcmask 1043456
    %v147 = vsel %vm145, %v134, 0
    %149 = vmatprep.subr.bf16.mxu0 0
    %150 = vmatpush1.bf16.msra.mxu0 %v147
    %151 = vmatprep.subr.bf16.mxu0 0
    %152 = vmatpush1.bf16.msra.mxu0 0
    %153 = vmatprep.subr.bf16.mxu0 0
    %154 = vmatpush1.bf16.msra.mxu0 0
    %155 = vmatprep.subr.bf16.mxu0 0
    %156 = vmatpush1.bf16.msra.mxu0 0
    %157 = vmatprep.subr.bf16.mxu0 0
    %158 = vmatpush1.bf16.msra.mxu0 0
    %159 = vmatprep.subr.bf16.mxu0 0
    %160 = vmatpush1.bf16.msra.mxu0 0
    %161 = vmatprep.subr.bf16.mxu0 0
    %162 = vmatpush1.bf16.msra.mxu0 0
    %163 = vmatprep.subr.bf16.mxu0 0
    %164 = vmatpush1.bf16.msra.mxu0 0
    %165 = vmatprep.subr.bf16.mxu0 0
    %166 = vmatpush1.bf16.msra.mxu0 0
    %167 = vmatprep.subr.bf16.mxu0 0
    %168 = vmatpush1.bf16.msra.mxu0 0
    %169 = vmatprep.subr.bf16.mxu0 0
    %170 = vmatpush1.bf16.msra.mxu0 0
    %171 = vmatprep.subr.bf16.mxu0 0
    %172 = vmatpush1.bf16.msra.mxu0 0
    %173 = vmatprep.subr.bf16.mxu0 0
    %174 = vmatpush1.bf16.msra.mxu0 0
    %175 = vmatprep.subr.bf16.mxu0 0
    %176 = vmatpush1.bf16.msra.mxu0 0
    %177 = vmatprep.subr.bf16.mxu0 0
    %178 = vmatpush1.bf16.msra.mxu0 0
    %179 = vmatprep.subr.bf16.mxu0 0
    %180 = vmatpush1.bf16.msra.mxu0 0
    %181 = vmatprep.mubr.bf16.mxu0 0
    %182 = vmatmul.mubr.bf16.gmra.mrb[0].mxu0 %v143
    %v183 = vpop.f32.mrb[0].mxu0
    %v184 = vadd.f32 %v139, %v183
    %v185 = vpop.f32.mrb[0].mxu0
    %v186 = vpop.f32.mrb[0].mxu0
    %v187 = vpop.f32.mrb[0].mxu0
    %188 = vdwg.mxu0
    %v189 = vmax.f32 %v184, 0.0
    %v190 = vmin.f32 %v189, 6.0
    %191 = vst [vmem:[#allocation2] sm:$0xf] %v190
    // Predicated region
    $region34: #{tpu_custom_call.1} parent=1 // pred_check
      _
    $region35: #{tpu_custom_call.1} parent=1 // pred_check_branch
      %193 = sbr.rel (0) target = $region37
    $region36: #{tpu_custom_call.1} parent=1 // pred_region
      %s195 = ssub.s32 64, 64
      %196 = vsyncadd [#allocation3], %s195
      %s198 = sshll.u32 [#allocation2], 4
      %s199 = int_to_ptr.vmem [resolvable:$true] %s198
      %201 = dma.vmem_to_hbm [thread:$0]  %s199, 64, %s8, [#allocation3]
    $region37: #{tpu_custom_call.1} parent=1 // pred_fallthru
      _
    // Predicated region
    $region38: #{tpu_custom_call.1} parent=1 // pred_check
      _
    $region39: #{tpu_custom_call.1} parent=1 // pred_check_branch
      %203 = sbr.rel (0) target = $region41
    $region40: #{tpu_custom_call.1} parent=1 // pred_region
      %204 = dma.done [#allocation3], 64
    $region41: #{tpu_custom_call.1} parent=1 // pred_fallthru
      _
    %205 = vsyncpa [#allocation3], 1

</llo_original>
